<compile_context>
chip_gen: v7x
topology: tpu7x:2x2x1
jax: 0.10.0
libtpu: 0.0.40
codegen_flags: <defaults>
</compile_context>

<pallas_src>
import jax
import jax.numpy as jnp
from jax import lax
from jax.experimental import pallas as pl
from jax.experimental.pallas import tpu as pltpu


def _classifier_kernel(x_ref, w_ref, b_ref, o_ref):
    # logits = x @ W.T + b, with W in native (C, D) layout (contract dim 1 of both).
    logits = lax.dot_general(
        x_ref[...], w_ref[...],
        dimension_numbers=(((1,), (1,)), ((), ())),
        preferred_element_type=jnp.float32,
    )
    logits = logits + b_ref[...]                      # (TB, C) + (1, C)

    # Numerically-stable softmax over the class axis.
    m = jnp.max(logits, axis=-1, keepdims=True)
    e = jnp.exp(logits - m)
    denom = jnp.sum(e, axis=-1, keepdims=True)

    # EUP approximate reciprocal + one Newton step: r <- r * (2 - d * r).
    r = pl.reciprocal(denom, approx=True)
    r = r * (2.0 - denom * r)

    o_ref[...] = (e * r).astype(o_ref.dtype)


def embedding_classifier(x, weight, bias):
    """x: (B, D) f32; weight: (C, D) f32 (PyTorch layout); bias: (C,) f32."""
    B, D = x.shape
    C = weight.shape[0]

    bias2d = bias.reshape(1, C).astype(jnp.float32)

    # Batch tiling: single block for B <= 1024; 1024-row tiles at scale
    # (>= 2 grid steps -> both v7x TensorCores stream half the batch;
    #  ~3 MiB x-tile double-buffered fits v5e's 16 MiB scoped-VMEM default).
    TB = B if B <= 1024 else 1024
    grid_len = pl.cdiv(B, TB)

    if grid_len > 1:
        # Deeper pipelining on the dominant (x) stream.
        x_spec = pl.BlockSpec((TB, D), lambda i: (i, 0),
                              pipeline_mode=pl.Buffered(3))
    else:
        x_spec = pl.BlockSpec((TB, D), lambda i: (i, 0))

    cost = pl.CostEstimate(
        flops=2 * B * C * D,
        transcendentals=B * C,
        bytes_accessed=(B * D + C * D + C + B * C) * 4,  # dominated by x
    )

    return pl.pallas_call(
        _classifier_kernel,
        out_shape=jax.ShapeDtypeStruct((B, C), jnp.float32),
        grid_spec=pl.GridSpec(
            grid=(grid_len,),
            in_specs=[
                x_spec,                                      # x tile (streamed)
                pl.BlockSpec((C, D), lambda i: (0, 0)),      # weight (VMEM-resident)
                pl.BlockSpec((1, C), lambda i: (0, 0)),      # bias   (VMEM-resident)
            ],
            out_specs=pl.BlockSpec((TB, C), lambda i: (i, 0)),
        ),
        compiler_params=pltpu.CompilerParams(
            dimension_semantics=("parallel",)),
        cost_estimate=cost,
    )(x, weight.astype(jnp.float32), bias2d)


def _reference(x, weight, bias):
    logits = x @ weight.T + bias
    return jax.nn.softmax(logits, axis=1)


if __name__ == "__main__":
    key = jax.random.PRNGKey(0)
    k_x, k_w, k_b = jax.random.split(key, 3)

    batch, input_dim, num_classes = 8, 768, 4

    # Deterministic parameter init (mimics nn.Linear's uniform(-1/sqrt(D), 1/sqrt(D)))
    bound = 1.0 / (input_dim ** 0.5)
    weight = jax.random.uniform(k_w, (num_classes, input_dim),
                                minval=-bound, maxval=bound, dtype=jnp.float32)
    bias = jax.random.uniform(k_b, (num_classes,),
                              minval=-bound, maxval=bound, dtype=jnp.float32)
    x = jax.random.normal(k_x, (batch, input_dim), dtype=jnp.float32)

    fwd = jax.jit(embedding_classifier)
    probs = fwd(x, weight, bias)
    jax.block_until_ready(probs)

    ref = _reference(x, weight, bias)
    assert probs.shape == (batch, num_classes)
    assert jnp.allclose(probs, ref, atol=1e-5, rtol=1e-5), "mismatch vs reference"
    assert jnp.allclose(jnp.sum(probs, axis=1), 1.0, atol=1e-5), "rows must sum to 1"

    print("KERNEL_OK")
</pallas_src>

<mosaic_0001>
module attributes {stable_mosaic.version = 11 : i64} {
  func.func @_classifier_kernel(%arg0: i32, %arg1: memref<8x768xf32, #tpu.memory_space<vmem>>, %arg2: memref<4x768xf32, #tpu.memory_space<vmem>>, %arg3: memref<1x4xf32, #tpu.memory_space<vmem>>, %arg4: memref<8x4xf32, #tpu.memory_space<vmem>>) attributes {dimension_semantics = [#tpu.dimension_semantics<parallel>], iteration_bounds = array<i64: 1>, scalar_prefetch = 0 : i64, scratch_operands = 0 : i64, tpu.core_type = #tpu.core_type<tc>, window_params = [{transform_indices = @transform_0, window_bounds = array<i64: 8, 768>}, {pipeline_mode = #tpu.pipeline_mode<synchronous>, transform_indices = @transform_1, window_bounds = array<i64: 4, 768>}, {pipeline_mode = #tpu.pipeline_mode<synchronous>, transform_indices = @transform_2, window_bounds = array<i64: 1, 4>}, {transform_indices = @transform_3, window_bounds = array<i64: 8, 4>}]} {
    %c0 = arith.constant 0 : index
    %c0_0 = arith.constant 0 : index
    %0 = vector.load %arg1[%c0, %c0_0] : memref<8x768xf32, #tpu.memory_space<vmem>>, vector<8x768xf32>
    %c0_1 = arith.constant 0 : index
    %c0_2 = arith.constant 0 : index
    %1 = vector.load %arg2[%c0_1, %c0_2] : memref<4x768xf32, #tpu.memory_space<vmem>>, vector<4x768xf32>
    %cst = arith.constant dense<0.000000e+00> : vector<8x4xf32>
    %2 = tpu.matmul %0, %1, %cst {dimension_numbers = #tpu.dot_dimension_numbers<[1], [1], [0], [0], [0, 0, 1, 0], [], []>} : vector<8x768xf32>, vector<4x768xf32>, vector<8x4xf32> -> vector<8x4xf32>
    %c0_3 = arith.constant 0 : index
    %c0_4 = arith.constant 0 : index
    %3 = vector.load %arg3[%c0_3, %c0_4] : memref<1x4xf32, #tpu.memory_space<vmem>>, vector<1x4xf32>
    %4 = vector.broadcast %3 : vector<1x4xf32> to vector<8x4xf32>
    %5 = arith.addf %2, %4 : vector<8x4xf32>
    %cst_5 = arith.constant dense<0xFF800000> : vector<8xf32>
    %6 = vector.multi_reduction <maximumf>, %5, %cst_5 [1] : vector<8x4xf32> to vector<8xf32>
    %7 = vector.shape_cast %6 : vector<8xf32> to vector<8x1xf32>
    %8 = vector.broadcast %7 : vector<8x1xf32> to vector<8x4xf32>
    %9 = arith.subf %5, %8 : vector<8x4xf32>
    %10 = math.exp %9 : vector<8x4xf32>
    %cst_6 = arith.constant dense<0.000000e+00> : vector<8xf32>
    %11 = vector.multi_reduction <add>, %10, %cst_6 [1] : vector<8x4xf32> to vector<8xf32>
    %12 = vector.shape_cast %11 : vector<8xf32> to vector<8x1xf32>
    %13 = tpu.reciprocal %12 {approx = true} : vector<8x1xf32> -> vector<8x1xf32>
    %14 = arith.mulf %12, %13 : vector<8x1xf32>
    %cst_7 = arith.constant 2.000000e+00 : f32
    %15 = vector.broadcast %cst_7 : f32 to vector<8x1xf32>
    %16 = arith.subf %15, %14 : vector<8x1xf32>
    %17 = arith.mulf %13, %16 : vector<8x1xf32>
    %18 = vector.broadcast %17 : vector<8x1xf32> to vector<8x4xf32>
    %19 = arith.mulf %10, %18 : vector<8x4xf32>
    %c0_8 = arith.constant 0 : index
    %c0_9 = arith.constant 0 : index
    %20 = vector.load %arg4[%c0_8, %c0_9] : memref<8x4xf32, #tpu.memory_space<vmem>>, vector<8x4xf32>
    tpu.vector_store %arg4[%c0_8, %c0_9], %19 {strides = array<i32>} : memref<8x4xf32, #tpu.memory_space<vmem>>, vector<8x4xf32>,
    return
  }
  func.func @transform_0(%arg0: i32) -> (i32, i32) {
    %c0_i32 = arith.constant 0 : i32
    %c0_i32_0 = arith.constant 0 : i32
    return %arg0, %c0_i32 : i32, i32
  }
  func.func @transform_1(%arg0: i32) -> (i32, i32) {
    %c0_i32 = arith.constant 0 : i32
    %c0_i32_0 = arith.constant 0 : i32
    %c0_i32_1 = arith.constant 0 : i32
    return %c0_i32, %c0_i32_0 : i32, i32
  }
  func.func @transform_2(%arg0: i32) -> (i32, i32) {
    %c0_i32 = arith.constant 0 : i32
    %c0_i32_0 = arith.constant 0 : i32
    %c0_i32_1 = arith.constant 0 : i32
    return %c0_i32, %c0_i32_0 : i32, i32
  }
  func.func @transform_3(%arg0: i32) -> (i32, i32) {
    %c0_i32 = arith.constant 0 : i32
    %c0_i32_0 = arith.constant 0 : i32
    return %arg0, %c0_i32 : i32, i32
  }
}

</mosaic_0001>

<llo_original>
// kernel: embedding_classifier.1
$region0: #{embedding_classifier.1}
  #allocation0 [shape = 'u32[]', space=smem, size = 0x4, offset = 0x4, fixed_abs, tag = 'smem constant byte address 0x4 - core index']
  #allocation1 [shape = 'u32[144,128]{1,0:T(1,128)}', space=vmem, size = 0x12000, scoped, tag = 'internal scratch']
  %s0 = inlined_call_operand.hbm [shape: f32[8,768], index: 0, kind: input, shape index: {}]
  %s1 = inlined_call_operand.hbm [shape: f32[4,768], index: 1, kind: input, shape index: {}]
  %s2 = inlined_call_operand.vmem [shape: f32[1,4], index: 2, kind: input, shape index: {}]
  %s3 = inlined_call_operand.vmem [shape: f32[8,4], index: 3, kind: output, shape index: {}]
  %s4 = sld [smem:[#allocation0]]
  $region30: #{embedding_classifier.1} parent=0
    _
  %s6 = ssub.s32 1, %s4
  %s7 = scalar_select 0, %s6, %s4
  $region1: #{embedding_classifier.1} parent=0
    #allocation2 [shape = 'u8[24576]{0}', space=vmem, size = 0x6000, scoped, tag = 'input window, operand 0, single buffered']
    #allocation3 [shape = 's32[1]{0}', space=sflag, size = 0x4, scoped, tag = 'scoped memory for embedding_classifier.1']
    #allocation4 [shape = 'u8[12288]{0}', space=vmem, size = 0x3000, scoped, tag = 'input window, operand 1, single buffered']
    #allocation5 [shape = 's32[1]{0}', space=sflag, size = 0x4, scoped, tag = 'scoped memory for embedding_classifier.1']
    %8 = vsyncpa [#allocation3], 0
    %9 = vsyncpa [#allocation5], 0
    // Predicated region
    $region2: #{embedding_classifier.1} parent=1 // pred_check
      _
    $region3: #{embedding_classifier.1} parent=1 // pred_check_branch
      %11 = sbr.rel (0) target = $region5
    $region4: #{embedding_classifier.1} parent=1 // pred_region
      %s13 = ssub.s32 768, 768
      %14 = vsyncadd [#allocation3], %s13
      %s16 = sshll.u32 [#allocation2], 4
      %s17 = int_to_ptr.vmem [resolvable:$true] %s16
      %19 = dma.hbm_to_vmem [thread:$0]  %s0, 768, %s17, [#allocation3]
    $region5: #{embedding_classifier.1} parent=1 // pred_fallthru
      _
    // Predicated region
    $region6: #{embedding_classifier.1} parent=1 // pred_check
      _
    $region7: #{embedding_classifier.1} parent=1 // pred_check_branch
      %21 = sbr.rel (0) target = $region9
    $region8: #{embedding_classifier.1} parent=1 // pred_region
      %s23 = ssub.s32 384, 384
      %24 = vsyncadd [#allocation5], %s23
      %s26 = sshll.u32 [#allocation4], 4
      %s27 = int_to_ptr.vmem [resolvable:$true] %s26
      %29 = dma.hbm_to_vmem [thread:$0]  %s1, 384, %s27, [#allocation5]
    $region9: #{embedding_classifier.1} parent=1 // pred_fallthru
      _
    // Predicated region
    $region10: #{embedding_classifier.1} parent=1 // pred_check
      _
    $region11: #{embedding_classifier.1} parent=1 // pred_check_branch
      %31 = sbr.rel (0) target = $region13
    $region12: #{embedding_classifier.1} parent=1 // pred_region
      _
    $region13: #{embedding_classifier.1} parent=1 // pred_fallthru
      _
    // Predicated region
    $region14: #{embedding_classifier.1} parent=1 // pred_check
      _
    $region15: #{embedding_classifier.1} parent=1 // pred_check_branch
      %33 = sbr.rel (0) target = $region17
    $region16: #{embedding_classifier.1} parent=1 // pred_region
      %34 = dma.done [#allocation3], 768
    $region17: #{embedding_classifier.1} parent=1 // pred_fallthru
      _
    // Predicated region
    $region18: #{embedding_classifier.1} parent=1 // pred_check
      _
    $region19: #{embedding_classifier.1} parent=1 // pred_check_branch
      %36 = sbr.rel (0) target = $region21
    $region20: #{embedding_classifier.1} parent=1 // pred_region
      %37 = dma.done [#allocation5], 384
    $region21: #{embedding_classifier.1} parent=1 // pred_fallthru
      _
    %v38 = vld [vmem:[#allocation2] sm:$0xff]
    %v39 = vld [vmem:[#allocation2 + $0x8] sm:$0xff]
    %v40 = vld [vmem:[#allocation2 + $0x10] sm:$0xff]
    %v41 = vld [vmem:[#allocation2 + $0x18] sm:$0xff]
    %v42 = vld [vmem:[#allocation2 + $0x20] sm:$0xff]
    %v43 = vld [vmem:[#allocation2 + $0x28] sm:$0xff]
    %v44 = vld [vmem:[#allocation4] sm:$0xff]
    %v45 = vld [vmem:[#allocation4 + $0x8] sm:$0xff]
    %v46 = vld [vmem:[#allocation4 + $0x10] sm:$0xff]
    %v47 = vld [vmem:[%s2] sm:$0x1]
    %v49 = vlaneseq
    %v50 = vshrl.u32 %v49, 7
    %v51 = vsub.s32 0, %v50
    %v52 = vrot.slane %v47, %v51
    %v57 = vcombine.high %v44, %v44
    %v58 = vcombine.high %v45, %v45
    %v59 = vcombine.high %v46, %v46
    %63 = vmatprep.subr.mxu0 %v57
    %64 = vmatpush1.xpose.msra.mxu0 %v44
    %65 = vmatprep.subr.mxu0 0.0
    %66 = vmatpush1.xpose.msra.mxu0 0.0
    %67 = vmatprep.subr.mxu0 0.0
    %68 = vmatpush1.xpose.msra.mxu0 0.0
    %69 = vmatprep.subr.mxu0 0.0
    %70 = vmatpush1.xpose.msra.mxu0 0.0
    %71 = vmatprep.subr.mxu0 0.0
    %72 = vmatpush1.xpose.msra.mxu0 0.0
    %73 = vmatprep.subr.mxu0 0.0
    %74 = vmatpush1.xpose.msra.mxu0 0.0
    %75 = vmatprep.subr.mxu0 0.0
    %76 = vmatpush1.xpose.msra.mxu0 0.0
    %77 = vmatprep.subr.mxu0 0.0
    %78 = vmatpush1.xpose.msra.mxu0 0.0
    %79 = vmatprep.subr.mxu0 0.0
    %80 = vmatpush1.xpose.msra.mxu0 0.0
    %81 = vmatprep.subr.mxu0 0.0
    %82 = vmatpush1.xpose.msra.mxu0 0.0
    %83 = vmatprep.subr.mxu0 0.0
    %84 = vmatpush1.xpose.msra.mxu0 0.0
    %85 = vmatprep.subr.mxu0 0.0
    %86 = vmatpush1.xpose.msra.mxu0 0.0
    %87 = vmatprep.subr.mxu0 0.0
    %88 = vmatpush1.xpose.msra.mxu0 0.0
    %89 = vmatprep.subr.mxu0 0.0
    %90 = vmatpush1.xpose.msra.mxu0 0.0
    %91 = vmatprep.subr.mxu0 0.0
    %92 = vmatpush1.xpose.msra.mxu0 0.0
    %93 = vmatprep.subr.mxu0 0.0
    %94 = vmatpush1.xpose.msra.mxu0 0.0
    %95 = vmatprep.subr.mxu0 0.0
    %96 = vmatpush1.xpose.msra.mxu0 0.0
    %97 = vmatprep.subr.mxu0 0.0
    %98 = vmatpush1.xpose.msra.mxu0 0.0
    %99 = vmatprep.subr.mxu0 0.0
    %100 = vmatpush1.xpose.msra.mxu0 0.0
    %101 = vmatprep.subr.mxu0 0.0
    %102 = vmatpush1.xpose.msra.mxu0 0.0
    %103 = vmatprep.subr.mxu0 0.0
    %104 = vmatpush1.xpose.msra.mxu0 0.0
    %105 = vmatprep.subr.mxu0 0.0
    %106 = vmatpush1.xpose.msra.mxu0 0.0
    %107 = vmatprep.subr.mxu0 0.0
    %108 = vmatpush1.xpose.msra.mxu0 0.0
    %109 = vmatprep.subr.mxu0 0.0
    %110 = vmatpush1.xpose.msra.mxu0 0.0
    %111 = vmatprep.subr.mxu0 0.0
    %112 = vmatpush1.xpose.msra.mxu0 0.0
    %113 = vmatprep.subr.mxu0 0.0
    %114 = vmatpush1.xpose.msra.mxu0 0.0
    %115 = vmatprep.subr.mxu0 0.0
    %116 = vmatpush1.xpose.msra.mxu0 0.0
    %117 = vmatprep.subr.mxu0 0.0
    %118 = vmatpush1.xpose.msra.mxu0 0.0
    %119 = vmatprep.subr.mxu0 0.0
    %120 = vmatpush1.xpose.msra.mxu0 0.0
    %121 = vmatprep.subr.mxu0 0.0
    %122 = vmatpush1.xpose.msra.mxu0 0.0
    %123 = vmatprep.subr.mxu0 0.0
    %124 = vmatpush1.xpose.msra.mxu0 0.0
    %125 = vmatprep.subr.mxu0 0.0
    %126 = vmatpush1.xpose.msra.mxu0 0.0
    %127 = vmatprep.mubr.f32.mxu0 %v39
    %128 = vmatmul.mubr.f32.gmra.mrb[0].mxu0 %v38
    %v129 = vpop.f32.mrb[0].mxu0
    %v130 = vadd.f32 %v52, %v129
    %v131 = vpop.f32.mrb[0].mxu0
    %132 = vdwg.mxu0
    %133 = vmatprep.subr.mxu0 %v58
    %134 = vmatpush1.xpose.msra.mxu0 %v45
    %135 = vmatprep.subr.mxu0 0.0
    %136 = vmatpush1.xpose.msra.mxu0 0.0
    %137 = vmatprep.subr.mxu0 0.0
    %138 = vmatpush1.xpose.msra.mxu0 0.0
    %139 = vmatprep.subr.mxu0 0.0
    %140 = vmatpush1.xpose.msra.mxu0 0.0
    %141 = vmatprep.subr.mxu0 0.0
    %142 = vmatpush1.xpose.msra.mxu0 0.0
    %143 = vmatprep.subr.mxu0 0.0
    %144 = vmatpush1.xpose.msra.mxu0 0.0
    %145 = vmatprep.subr.mxu0 0.0
    %146 = vmatpush1.xpose.msra.mxu0 0.0
    %147 = vmatprep.subr.mxu0 0.0
    %148 = vmatpush1.xpose.msra.mxu0 0.0
    %149 = vmatprep.subr.mxu0 0.0
    %150 = vmatpush1.xpose.msra.mxu0 0.0
    %151 = vmatprep.subr.mxu0 0.0
    %152 = vmatpush1.xpose.msra.mxu0 0.0
    %153 = vmatprep.subr.mxu0 0.0
    %154 = vmatpush1.xpose.msra.mxu0 0.0
    %155 = vmatprep.subr.mxu0 0.0
    %156 = vmatpush1.xpose.msra.mxu0 0.0
    %157 = vmatprep.subr.mxu0 0.0
    %158 = vmatpush1.xpose.msra.mxu0 0.0
    %159 = vmatprep.subr.mxu0 0.0
    %160 = vmatpush1.xpose.msra.mxu0 0.0
    %161 = vmatprep.subr.mxu0 0.0
    %162 = vmatpush1.xpose.msra.mxu0 0.0
    %163 = vmatprep.subr.mxu0 0.0
    %164 = vmatpush1.xpose.msra.mxu0 0.0
    %165 = vmatprep.subr.mxu0 0.0
    %166 = vmatpush1.xpose.msra.mxu0 0.0
    %167 = vmatprep.subr.mxu0 0.0
    %168 = vmatpush1.xpose.msra.mxu0 0.0
    %169 = vmatprep.subr.mxu0 0.0
    %170 = vmatpush1.xpose.msra.mxu0 0.0
    %171 = vmatprep.subr.mxu0 0.0
    %172 = vmatpush1.xpose.msra.mxu0 0.0
    %173 = vmatprep.subr.mxu0 0.0
    %174 = vmatpush1.xpose.msra.mxu0 0.0
    %175 = vmatprep.subr.mxu0 0.0
    %176 = vmatpush1.xpose.msra.mxu0 0.0
    %177 = vmatprep.subr.mxu0 0.0
    %178 = vmatpush1.xpose.msra.mxu0 0.0
    %179 = vmatprep.subr.mxu0 0.0
    %180 = vmatpush1.xpose.msra.mxu0 0.0
    %181 = vmatprep.subr.mxu0 0.0
    %182 = vmatpush1.xpose.msra.mxu0 0.0
    %183 = vmatprep.subr.mxu0 0.0
    %184 = vmatpush1.xpose.msra.mxu0 0.0
    %185 = vmatprep.subr.mxu0 0.0
    %186 = vmatpush1.xpose.msra.mxu0 0.0
    %187 = vmatprep.subr.mxu0 0.0
    %188 = vmatpush1.xpose.msra.mxu0 0.0
    %189 = vmatprep.subr.mxu0 0.0
    %190 = vmatpush1.xpose.msra.mxu0 0.0
    %191 = vmatprep.subr.mxu0 0.0
    %192 = vmatpush1.xpose.msra.mxu0 0.0
    %193 = vmatprep.subr.mxu0 0.0
    %194 = vmatpush1.xpose.msra.mxu0 0.0
    %195 = vmatprep.subr.mxu0 0.0
    %196 = vmatpush1.xpose.msra.mxu0 0.0
    %197 = vmatprep.mubr.f32.mxu0 %v41
    %198 = vmatmul.mubr.f32.gmra.mrb[0].mxu0 %v40
    %v199 = vpop.f32.mrb[0].mxu0
    %v200 = vadd.f32 %v130, %v199
    %v201 = vpop.f32.mrb[0].mxu0
    %202 = vdwg.mxu0
    %203 = vmatprep.subr.mxu0 %v59
    %204 = vmatpush1.xpose.msra.mxu0 %v46
    %205 = vmatprep.subr.mxu0 0.0
    %206 = vmatpush1.xpose.msra.mxu0 0.0
    %207 = vmatprep.subr.mxu0 0.0
    %208 = vmatpush1.xpose.msra.mxu0 0.0
    %209 = vmatprep.subr.mxu0 0.0
    %210 = vmatpush1.xpose.msra.mxu0 0.0
    %211 = vmatprep.subr.mxu0 0.0
    %212 = vmatpush1.xpose.msra.mxu0 0.0
    %213 = vmatprep.subr.mxu0 0.0
    %214 = vmatpush1.xpose.msra.mxu0 0.0
    %215 = vmatprep.subr.mxu0 0.0
    %216 = vmatpush1.xpose.msra.mxu0 0.0
    %217 = vmatprep.subr.mxu0 0.0
    %218 = vmatpush1.xpose.msra.mxu0 0.0
    %219 = vmatprep.subr.mxu0 0.0
    %220 = vmatpush1.xpose.msra.mxu0 0.0
    %221 = vmatprep.subr.mxu0 0.0
    %222 = vmatpush1.xpose.msra.mxu0 0.0
    %223 = vmatprep.subr.mxu0 0.0
    %224 = vmatpush1.xpose.msra.mxu0 0.0
    %225 = vmatprep.subr.mxu0 0.0
    %226 = vmatpush1.xpose.msra.mxu0 0.0
    %227 = vmatprep.subr.mxu0 0.0
    %228 = vmatpush1.xpose.msra.mxu0 0.0
    %229 = vmatprep.subr.mxu0 0.0
    %230 = vmatpush1.xpose.msra.mxu0 0.0
    %231 = vmatprep.subr.mxu0 0.0
    %232 = vmatpush1.xpose.msra.mxu0 0.0
    %233 = vmatprep.subr.mxu0 0.0
    %234 = vmatpush1.xpose.msra.mxu0 0.0
    %235 = vmatprep.subr.mxu0 0.0
    %236 = vmatpush1.xpose.msra.mxu0 0.0
    %237 = vmatprep.subr.mxu0 0.0
    %238 = vmatpush1.xpose.msra.mxu0 0.0
    %239 = vmatprep.subr.mxu0 0.0
    %240 = vmatpush1.xpose.msra.mxu0 0.0
    %241 = vmatprep.subr.mxu0 0.0
    %242 = vmatpush1.xpose.msra.mxu0 0.0
    %243 = vmatprep.subr.mxu0 0.0
    %244 = vmatpush1.xpose.msra.mxu0 0.0
    %245 = vmatprep.subr.mxu0 0.0
    %246 = vmatpush1.xpose.msra.mxu0 0.0
    %247 = vmatprep.subr.mxu0 0.0
    %248 = vmatpush1.xpose.msra.mxu0 0.0
    %249 = vmatprep.subr.mxu0 0.0
    %250 = vmatpush1.xpose.msra.mxu0 0.0
    %251 = vmatprep.subr.mxu0 0.0
    %252 = vmatpush1.xpose.msra.mxu0 0.0
    %253 = vmatprep.subr.mxu0 0.0
    %254 = vmatpush1.xpose.msra.mxu0 0.0
    %255 = vmatprep.subr.mxu0 0.0
    %256 = vmatpush1.xpose.msra.mxu0 0.0
    %257 = vmatprep.subr.mxu0 0.0
    %258 = vmatpush1.xpose.msra.mxu0 0.0
    %259 = vmatprep.subr.mxu0 0.0
    %260 = vmatpush1.xpose.msra.mxu0 0.0
    %261 = vmatprep.subr.mxu0 0.0
    %262 = vmatpush1.xpose.msra.mxu0 0.0
    %263 = vmatprep.subr.mxu0 0.0
    %264 = vmatpush1.xpose.msra.mxu0 0.0
    %265 = vmatprep.subr.mxu0 0.0
    %266 = vmatpush1.xpose.msra.mxu0 0.0
    %267 = vmatprep.mubr.f32.mxu0 %v43
    %268 = vmatmul.mubr.f32.gmra.mrb[0].mxu0 %v42
    %v269 = vpop.f32.mrb[0].mxu0
    %v270 = vadd.f32 %v200, %v269
    %v271 = vpop.f32.mrb[0].mxu0
    %272 = vdwg.mxu0
    %vm273 = vcmask 31744
    %v274 = vsel %vm273, %v270, -inf
    %275 = vmax.xlane.f32.xlu0 %v274
    %v276 = vpop.xlane.xlu0 %275
    %v277 = vsub.f32 %v270, %v276
    %v278 = vmul.f32 %v277, 1.442695
    %v279 = vpow.pop %v278
    %v280 = vsel %vm273, %v279, 0.0
    %281 = vadd.xlane.f32.xlu0 %v280
    %v282 = vpop.xlane.xlu0 %281
    %v283 = vrcp.pop %v282
    %v284 = vmul.f32 %v282, %v283
    %v285 = vsub.f32 2.0, %v284
    %v286 = vmul.f32 %v283, %v285
    %v287 = vmul.f32 %v279, %v286
    %288 = vst.msk [vmem:[%s3] sm:$0xff] %vm273, %v287
    // Predicated region
    $region22: #{embedding_classifier.1} parent=1 // pred_check
      _
    $region23: #{embedding_classifier.1} parent=1 // pred_check_branch
      %290 = sbr.rel (0) target = $region25
    $region24: #{embedding_classifier.1} parent=1 // pred_region
      _
    $region25: #{embedding_classifier.1} parent=1 // pred_fallthru
      _
    // Predicated region
    $region26: #{embedding_classifier.1} parent=1 // pred_check
      _
    $region27: #{embedding_classifier.1} parent=1 // pred_check_branch
      %292 = sbr.rel (0) target = $region29
    $region28: #{embedding_classifier.1} parent=1 // pred_region
      _
    $region29: #{embedding_classifier.1} parent=1 // pred_fallthru
      _
    %293 = vsyncpa [#allocation3], 1
    %294 = vsyncpa [#allocation5], 1

</llo_original>
